<compile_context>
chip_gen: v5e
topology: v5e:2x2
jax: 0.10.0
libtpu: 0.0.40
codegen_flags: <defaults>
</compile_context>

<pallas_src>
import functools

import jax
import jax.numpy as jnp
from jax.experimental import pallas as pl
from jax.experimental.pallas import tpu as pltpu


def _cdiv(a, b):
    return -(-a // b)


def _tpu_info():
    """Best-effort (tensorcores_per_device, physical_vmem_bytes) for the local TPU."""
    cores, vmem = 1, 64 << 20            # conservative defaults (v7x has the least VMEM)
    kind = ""
    try:
        kind = jax.devices()[0].device_kind.lower()
    except Exception:
        pass
    try:
        info = pltpu.get_tpu_info()
        for attr in ("num_cores", "num_tensorcores", "num_tensor_cores",
                     "tensorcore_count", "core_count"):
            v = getattr(info, attr, None)
            if isinstance(v, int) and v > 0:
                cores = v
                break
        for attr in ("vmem_capacity_bytes", "vmem_size_bytes", "vmem_bytes",
                     "vmem_capacity"):
            v = getattr(info, attr, None)
            if isinstance(v, int) and v > 0:
                vmem = v
                break
    except Exception:
        pass
    if ("v7" in kind) or ("7x" in kind):
        cores = max(cores, 2)                      # v7x: 2 TensorCores per chip
    elif ("v5" in kind) or ("v6" in kind):
        vmem = max(vmem, 128 << 20)                # v5e / v6e: 128 MiB physical VMEM
    elif ("v2" in kind) or ("v3" in kind):
        vmem = min(vmem, 16 << 20)
    return max(1, min(cores, 2)), vmem


def _ppo_loss_kernel(probs_ref, side_ref, out_ref, acc_ref, *, e, c, g):
    """One (tb, W) lane-folded tile.

    probs_ref : (tb, W)   policy probs, native dtype, W = g*A (g batch rows per lane row)
    side_ref  : (tb, 3g)  f32 sideband: [lane_bits(g) | scale(g) | gae(g)]
    out_ref   : (1, 8, W) lane-dense per-partial sums (written only at finalize)
    acc_ref   : (8, W)    f32 VMEM accumulator, resident across the inner grid axis
    """
    i = pl.program_id(1)

    @pl.when(i == 0)
    def _init():
        acc_ref[...] = jnp.zeros_like(acc_ref)

    probs = probs_ref[...].astype(jnp.float32)          # bf16 DMA, f32 compute
    side_f = side_ref[...]                              # (tb, 3g) f32
    side_i = pltpu.bitcast(side_f, jnp.int32)           # reinterpret; lane ids in cols [0, g)

    tb, w = probs.shape
    col = jax.lax.broadcasted_iota(jnp.int32, (tb, w), 1)

    # Lane-dense weight planes: scale / gae at each original row's chosen lane,
    # 0 elsewhere.  Non-chosen lanes then give ratio = clipped = 0, so a single
    # lane-dense pipeline + reduce yields sum_B(clipped_loss) with no post-select.
    ws = None
    wg = None
    for j in range(g):                                   # g is small & static -> unrolled
        m = col == side_i[:, j:j + 1]
        sj = jnp.where(m, side_f[:, g + j:g + j + 1], 0.0)
        gj = jnp.where(m, side_f[:, 2 * g + j:2 * g + j + 1], 0.0)
        ws = sj if ws is None else ws + sj
        wg = gj if wg is None else wg + gj

    ratio = probs * ws                                   # == np_prob / action_prob * gae
    clipped = jnp.clip(ratio, 1.0 - e, 1.0 + e) * wg
    contrib = jnp.minimum(ratio, clipped)

    if c is not None:
        # mean_B(entropy) == -sum_all(p * log(p + 1e-7)) / B, folded into the same
        # accumulator (final negate / divide-by-B happens in the wrapper).
        contrib = contrib - c * (probs * jnp.log(probs + 1e-7))

    # VALU-only partial accumulation into the (8, W) accumulator; the full
    # cross-lane / cross-sublane reduce happens exactly once, outside the kernel.
    acc_ref[...] += contrib.reshape(tb // 8, 8, w).sum(axis=0)

    @pl.when(i == pl.num_programs(1) - 1)
    def _finalize():
        out_ref[0] = acc_ref[...]


def ppo_loss(policy_probs, action_taken, action_prob, gae, *, e=0.1, c=None):
    """Pallas TPU implementation of PPOLoss.forward. Returns a scalar f32."""
    B, A = policy_probs.shape
    probs = policy_probs                               # keep native dtype (bf16 stays bf16)
    itemsize = jnp.dtype(probs.dtype).itemsize
    sub = max(8, 32 // max(1, itemsize))               # sublane tile: 8 f32 / 16 bf16 / 32 i8

    # ---- lane folding ------------------------------------------------------
    g = max(1, 128 // A) if A < 128 else 1             # original rows folded per lane row
    W = g * A                                          # folded lane width (128 when A | 128)
    W_pad = _cdiv(W, 128) * 128
    S = 3 * g                                          # sideband cols: lane | scale | gae
    S_pad = _cdiv(S, 128) * 128

    # ---- generation-aware partials & VMEM-aware tiling ----------------------
    cores, vmem_phys = _tpu_info()
    R_true = _cdiv(B, g)
    num_partials = cores if R_true >= 2 * sub else 1   # 2 only on 2-TC chips & non-tiny batch

    vmem_limit = int(min(max(vmem_phys * 3 // 4, 16 << 20), 64 << 20))
    probs_tile_target = (8 << 20) if vmem_phys >= (96 << 20) else (4 << 20)

    # Per-folded-row VMEM with lane padding, double buffering and an allowance for
    # the compiler's f32 intermediates (the corrected accounting from the review).
    f32_temp_slabs = 8
    bytes_per_row = (2 * W_pad * itemsize              # probs, double-buffered
                     + 2 * S_pad * 4                   # sideband (lane-padded), double-buffered
                     + f32_temp_slabs * W_pad * 4)     # in-kernel f32 temporaries
    usable = max(vmem_limit - (8 << 20), 4 << 20)
    budget_rows = max(sub, (usable // bytes_per_row) // sub * sub)
    target_rows = max(sub, (probs_tile_target // max(1, W_pad * itemsize)) // sub * sub)
    rows_budget = min(budget_rows, target_rows)

    rows_per_partial = _cdiv(_cdiv(R_true, num_partials), sub) * sub
    tb = int(min(rows_budget, rows_per_partial))
    nb = _cdiv(rows_per_partial, tb)
    R_pad = num_partials * nb * tb
    padded_B = R_pad * g
    pad = padded_B - B

    # ---- operands (padded rows contribute exactly 0 to the accumulator) -----
    act = action_taken.astype(jnp.int32).reshape(B)
    gae_f = gae.astype(jnp.float32).reshape(B)
    scale = gae_f / action_prob.astype(jnp.float32).reshape(B)   # precomputed: no in-kernel divide
    if pad:
        probs = jnp.pad(probs, ((0, pad), (0, 0)))     # p = 0   -> zero entropy contribution
        act = jnp.pad(act, (0, pad))
        gae_f = jnp.pad(gae_f, (0, pad))               # gae = 0 -> zero clip contribution
        scale = jnp.pad(scale, (0, pad))               # scale = 0 -> zero ratio
    lane = (jnp.arange(padded_B, dtype=jnp.int32) % g) * A + act  # chosen lane in the folded row
    lane_bits = jax.lax.bitcast_convert_type(lane, jnp.float32)
    side = jnp.concatenate([lane_bits.reshape(R_pad, g),
                            scale.reshape(R_pad, g),
                            gae_f.reshape(R_pad, g)], axis=1)     # (R_pad, 3g) f32
    probs_folded = probs.reshape(R_pad, W)

    kernel = functools.partial(_ppo_loss_kernel, e=float(e),
                               c=None if c is None else float(c), g=g)

    cost = pl.CostEstimate(
        flops=(6 + 5 * g + (3 if c is not None else 0)) * R_pad * W,
        transcendentals=(R_pad * W) if c is not None else 0,
        bytes_accessed=R_pad * (W * itemsize + S * 4) + num_partials * 8 * W * 4,
    )

    partials = pl.pallas_call(
        kernel,
        out_shape=jax.ShapeDtypeStruct((num_partials, 8, W), jnp.float32),
        grid_spec=pltpu.PrefetchScalarGridSpec(
            num_scalar_prefetch=0,
            grid=(num_partials, nb),
            in_specs=[
                pl.BlockSpec((tb, W), lambda p, i: (p * nb + i, 0)),
                pl.BlockSpec((tb, S), lambda p, i: (p * nb + i, 0)),
            ],
            out_specs=pl.BlockSpec((1, 8, W), lambda p, i: (p, 0, 0)),
            scratch_shapes=[pltpu.VMEM((8, W), jnp.float32)],
        ),
        compiler_params=pltpu.CompilerParams(
            dimension_semantics=("parallel", "arbitrary"),
            vmem_limit_bytes=vmem_limit,
        ),
        cost_estimate=cost,
    )(probs_folded, side)

    # Single cross-lane/sublane reduce, negate, and divide by the *true* batch size.
    return (-jnp.sum(partials) / B).astype(jnp.float32)


def _reference(policy_probs, action_taken, action_prob, gae, *, e=0.1, c=None):
    """Pure-JAX reference mirroring the PyTorch module, for sanity checking."""
    policy_probs = policy_probs.astype(jnp.float32)
    np_prob = jnp.take_along_axis(policy_probs, action_taken[:, None], axis=1)[:, 0]
    ratio = np_prob / action_prob * gae
    clipped_ratio = jnp.clip(ratio, 1.0 - e, 1.0 + e) * gae
    clipped_loss = jnp.minimum(ratio, clipped_ratio)
    total = -jnp.mean(clipped_loss)
    if c is not None:
        entropy = -jnp.sum(policy_probs * jnp.log(policy_probs + 1e-7), axis=-1)
        total = total - c * jnp.mean(entropy)
    return total


def _make_inputs(key, B, A, dtype):
    k1, k2, k3 = jax.random.split(key, 3)
    logits = jax.random.normal(k1, (B, A), dtype=jnp.float32)
    policy_probs = jax.nn.softmax(logits, axis=-1).astype(dtype)
    action_taken = jax.random.randint(k2, (B,), 0, A, dtype=jnp.int32)
    probs_f32 = policy_probs.astype(jnp.float32)
    action_prob = jnp.take_along_axis(probs_f32, action_taken[:, None], axis=1)[:, 0]
    action_prob = action_prob * 0.9 + 0.01
    gae = jax.random.normal(k3, (B,), dtype=jnp.float32)
    return policy_probs, action_taken, action_prob, gae


if __name__ == "__main__":
    root = jax.random.PRNGKey(0)
    k1, k2, k3 = jax.random.split(root, 3)
    e = 0.1

    # Config 1: f32 probs, entropy bonus enabled.
    pp, at, ap, gae_in = _make_inputs(k1, B=8, A=32, dtype=jnp.float32)
    out1 = jax.block_until_ready(ppo_loss(pp, at, ap, gae_in, e=e, c=0.01))
    ref1 = _reference(pp, at, ap, gae_in, e=e, c=0.01)
    assert jnp.allclose(out1, ref1, rtol=1e-4, atol=1e-5), (out1, ref1)

    # Config 2: ragged batch (exercises the safe-padding path), no entropy term.
    pp, at, ap, gae_in = _make_inputs(k2, B=13, A=32, dtype=jnp.float32)
    out2 = jax.block_until_ready(ppo_loss(pp, at, ap, gae_in, e=e, c=None))
    ref2 = _reference(pp, at, ap, gae_in, e=e, c=None)
    assert jnp.allclose(out2, ref2, rtol=1e-4, atol=1e-5), (out2, ref2)

    # Config 3: bf16 probs DMA'd natively (16-row sublane tiles), f32 compute inside.
    pp, at, ap, gae_in = _make_inputs(k3, B=8, A=32, dtype=jnp.bfloat16)
    out3 = jax.block_until_ready(ppo_loss(pp, at, ap, gae_in, e=e, c=0.01))
    ref3 = _reference(pp, at, ap, gae_in, e=e, c=0.01)
    assert jnp.allclose(out3, ref3, rtol=1e-3, atol=1e-3), (out3, ref3)

    print("KERNEL_OK")
</pallas_src>

<mosaic_0001>
module attributes {stable_mosaic.version = 11 : i64} {
  func.func @_ppo_loss_kernel(%arg0: i32, %arg1: i32, %arg2: memref<8x128xf32, #tpu.memory_space<vmem>>, %arg3: memref<8x12xf32, #tpu.memory_space<vmem>>, %arg4: memref<1x8x128xf32, #tpu.memory_space<vmem>>, %arg5: memref<8x128xf32, #tpu.memory_space<vmem>>) attributes {dimension_semantics = [#tpu.dimension_semantics<parallel>, #tpu.dimension_semantics<arbitrary>], iteration_bounds = array<i64: 1, 1>, scalar_prefetch = 0 : i64, scratch_operands = 1 : i64, tpu.core_type = #tpu.core_type<tc>, window_params = [{transform_indices = @transform_0, window_bounds = array<i64: 8, 128>}, {transform_indices = @transform_1, window_bounds = array<i64: 8, 12>}, {transform_indices = @transform_2, window_bounds = array<i64: 1, 8, 128>}]} {
    %c0_i32 = arith.constant 0 : i32
    %0 = arith.cmpi eq, %arg1, %c0_i32 : i32
    %1 = arith.extui %0 : i1 to i32
    %c0_i32_0 = arith.constant 0 : i32
    %2 = arith.cmpi ne, %1, %c0_i32_0 : i32
    scf.if %2 {
      %cst_22 = arith.constant 0.000000e+00 : f32
      %87 = vector.broadcast %cst_22 : f32 to vector<8x128xf32>
      %c0_23 = arith.constant 0 : index
      %c0_24 = arith.constant 0 : index
      %88 = vector.load %arg5[%c0_23, %c0_24] : memref<8x128xf32, #tpu.memory_space<vmem>>, vector<8x128xf32>
      tpu.vector_store %arg5[%c0_23, %c0_24], %87 {strides = array<i32>} : memref<8x128xf32, #tpu.memory_space<vmem>>, vector<8x128xf32>,
    } else {
    }
    %c0 = arith.constant 0 : index
    %c0_1 = arith.constant 0 : index
    %3 = vector.load %arg2[%c0, %c0_1] : memref<8x128xf32, #tpu.memory_space<vmem>>, vector<8x128xf32>
    %c0_2 = arith.constant 0 : index
    %c0_3 = arith.constant 0 : index
    %4 = vector.load %arg3[%c0_2, %c0_3] : memref<8x12xf32, #tpu.memory_space<vmem>>, vector<8x12xf32>
    %5 = tpu.bitcast %4 : vector<8x12xf32> -> vector<8x12xi32>
    %6 = tpu.iota {dimensions = array<i32: 1>} : vector<8x128xi32>
    %7 = vector.extract_strided_slice %5 {offsets = [0, 0], sizes = [8, 1], strides = [1, 1]} : vector<8x12xi32> to vector<8x1xi32>
    %8 = vector.broadcast %7 : vector<8x1xi32> to vector<8x128xi32>
    %9 = arith.cmpi eq, %6, %8 : vector<8x128xi32>
    %10 = vector.extract_strided_slice %4 {offsets = [0, 4], sizes = [8, 1], strides = [1, 1]} : vector<8x12xf32> to vector<8x1xf32>
    %cst = arith.constant 0.000000e+00 : f32
    %11 = vector.shape_cast %10 : vector<8x1xf32> to vector<8x1xf32>
    %12 = vector.broadcast %11 : vector<8x1xf32> to vector<8x128xf32>
    %13 = vector.broadcast %cst : f32 to vector<8x128xf32>
    %14 = arith.select %9, %12, %13 : vector<8x128xi1>, vector<8x128xf32>
    %15 = vector.extract_strided_slice %4 {offsets = [0, 8], sizes = [8, 1], strides = [1, 1]} : vector<8x12xf32> to vector<8x1xf32>
    %cst_4 = arith.constant 0.000000e+00 : f32
    %16 = vector.shape_cast %15 : vector<8x1xf32> to vector<8x1xf32>
    %17 = vector.broadcast %16 : vector<8x1xf32> to vector<8x128xf32>
    %18 = vector.broadcast %cst_4 : f32 to vector<8x128xf32>
    %19 = arith.select %9, %17, %18 : vector<8x128xi1>, vector<8x128xf32>
    %20 = vector.extract_strided_slice %5 {offsets = [0, 1], sizes = [8, 1], strides = [1, 1]} : vector<8x12xi32> to vector<8x1xi32>
    %21 = vector.broadcast %20 : vector<8x1xi32> to vector<8x128xi32>
    %22 = arith.cmpi eq, %6, %21 : vector<8x128xi32>
    %23 = vector.extract_strided_slice %4 {offsets = [0, 5], sizes = [8, 1], strides = [1, 1]} : vector<8x12xf32> to vector<8x1xf32>
    %cst_5 = arith.constant 0.000000e+00 : f32
    %24 = vector.shape_cast %23 : vector<8x1xf32> to vector<8x1xf32>
    %25 = vector.broadcast %24 : vector<8x1xf32> to vector<8x128xf32>
    %26 = vector.broadcast %cst_5 : f32 to vector<8x128xf32>
    %27 = arith.select %22, %25, %26 : vector<8x128xi1>, vector<8x128xf32>
    %28 = vector.extract_strided_slice %4 {offsets = [0, 9], sizes = [8, 1], strides = [1, 1]} : vector<8x12xf32> to vector<8x1xf32>
    %cst_6 = arith.constant 0.000000e+00 : f32
    %29 = vector.shape_cast %28 : vector<8x1xf32> to vector<8x1xf32>
    %30 = vector.broadcast %29 : vector<8x1xf32> to vector<8x128xf32>
    %31 = vector.broadcast %cst_6 : f32 to vector<8x128xf32>
    %32 = arith.select %22, %30, %31 : vector<8x128xi1>, vector<8x128xf32>
    %33 = arith.addf %14, %27 : vector<8x128xf32>
    %34 = arith.addf %19, %32 : vector<8x128xf32>
    %35 = vector.extract_strided_slice %5 {offsets = [0, 2], sizes = [8, 1], strides = [1, 1]} : vector<8x12xi32> to vector<8x1xi32>
    %36 = vector.broadcast %35 : vector<8x1xi32> to vector<8x128xi32>
    %37 = arith.cmpi eq, %6, %36 : vector<8x128xi32>
    %38 = vector.extract_strided_slice %4 {offsets = [0, 6], sizes = [8, 1], strides = [1, 1]} : vector<8x12xf32> to vector<8x1xf32>
    %cst_7 = arith.constant 0.000000e+00 : f32
    %39 = vector.shape_cast %38 : vector<8x1xf32> to vector<8x1xf32>
    %40 = vector.broadcast %39 : vector<8x1xf32> to vector<8x128xf32>
    %41 = vector.broadcast %cst_7 : f32 to vector<8x128xf32>
    %42 = arith.select %37, %40, %41 : vector<8x128xi1>, vector<8x128xf32>
    %43 = vector.extract_strided_slice %4 {offsets = [0, 10], sizes = [8, 1], strides = [1, 1]} : vector<8x12xf32> to vector<8x1xf32>
    %cst_8 = arith.constant 0.000000e+00 : f32
    %44 = vector.shape_cast %43 : vector<8x1xf32> to vector<8x1xf32>
    %45 = vector.broadcast %44 : vector<8x1xf32> to vector<8x128xf32>
    %46 = vector.broadcast %cst_8 : f32 to vector<8x128xf32>
    %47 = arith.select %37, %45, %46 : vector<8x128xi1>, vector<8x128xf32>
    %48 = arith.addf %33, %42 : vector<8x128xf32>
    %49 = arith.addf %34, %47 : vector<8x128xf32>
    %50 = vector.extract_strided_slice %5 {offsets = [0, 3], sizes = [8, 1], strides = [1, 1]} : vector<8x12xi32> to vector<8x1xi32>
    %51 = vector.broadcast %50 : vector<8x1xi32> to vector<8x128xi32>
    %52 = arith.cmpi eq, %6, %51 : vector<8x128xi32>
    %53 = vector.extract_strided_slice %4 {offsets = [0, 7], sizes = [8, 1], strides = [1, 1]} : vector<8x12xf32> to vector<8x1xf32>
    %cst_9 = arith.constant 0.000000e+00 : f32
    %54 = vector.shape_cast %53 : vector<8x1xf32> to vector<8x1xf32>
    %55 = vector.broadcast %54 : vector<8x1xf32> to vector<8x128xf32>
    %56 = vector.broadcast %cst_9 : f32 to vector<8x128xf32>
    %57 = arith.select %52, %55, %56 : vector<8x128xi1>, vector<8x128xf32>
    %58 = vector.extract_strided_slice %4 {offsets = [0, 11], sizes = [8, 1], strides = [1, 1]} : vector<8x12xf32> to vector<8x1xf32>
    %cst_10 = arith.constant 0.000000e+00 : f32
    %59 = vector.shape_cast %58 : vector<8x1xf32> to vector<8x1xf32>
    %60 = vector.broadcast %59 : vector<8x1xf32> to vector<8x128xf32>
    %61 = vector.broadcast %cst_10 : f32 to vector<8x128xf32>
    %62 = arith.select %52, %60, %61 : vector<8x128xi1>, vector<8x128xf32>
    %63 = arith.addf %48, %57 : vector<8x128xf32>
    %64 = arith.addf %49, %62 : vector<8x128xf32>
    %65 = arith.mulf %3, %63 : vector<8x128xf32>
    %cst_11 = arith.constant 0.899999976 : f32
    %cst_12 = arith.constant 1.100000e+00 : f32
    %66 = vector.broadcast %cst_11 : f32 to vector<8x128xf32>
    %67 = arith.maximumf %66, %65 : vector<8x128xf32>
    %68 = vector.broadcast %cst_12 : f32 to vector<8x128xf32>
    %69 = arith.minimumf %68, %67 : vector<8x128xf32>
    %70 = arith.mulf %69, %64 : vector<8x128xf32>
    %71 = arith.minimumf %65, %70 : vector<8x128xf32>
    %cst_13 = arith.constant 1.000000e-07 : f32
    %72 = vector.broadcast %cst_13 : f32 to vector<8x128xf32>
    %73 = arith.addf %3, %72 : vector<8x128xf32>
    %74 = math.log %73 : vector<8x128xf32>
    %75 = arith.mulf %3, %74 : vector<8x128xf32>
    %cst_14 = arith.constant 0.00999999977 : f32
    %76 = vector.broadcast %cst_14 : f32 to vector<8x128xf32>
    %77 = arith.mulf %76, %75 : vector<8x128xf32>
    %78 = arith.subf %71, %77 : vector<8x128xf32>
    %c0_15 = arith.constant 0 : index
    %c0_16 = arith.constant 0 : index
    %79 = vector.load %arg5[%c0_15, %c0_16] : memref<8x128xf32, #tpu.memory_space<vmem>>, vector<8x128xf32>
    %80 = vector.shape_cast %78 : vector<8x128xf32> to vector<1x8x128xf32>
    %cst_17 = arith.constant dense<0.000000e+00> : vector<8x128xf32>
    %81 = vector.multi_reduction <add>, %80, %cst_17 [0] : vector<1x8x128xf32> to vector<8x128xf32>
    %82 = arith.addf %79, %81 : vector<8x128xf32>
    %c0_18 = arith.constant 0 : index
    %c0_19 = arith.constant 0 : index
    %83 = vector.load %arg5[%c0_18, %c0_19] : memref<8x128xf32, #tpu.memory_space<vmem>>, vector<8x128xf32>
    tpu.vector_store %arg5[%c0_18, %c0_19], %82 {strides = array<i32>} : memref<8x128xf32, #tpu.memory_space<vmem>>, vector<8x128xf32>,
    %c0_i32_20 = arith.constant 0 : i32
    %84 = arith.cmpi eq, %arg1, %c0_i32_20 : i32
    %85 = arith.extui %84 : i1 to i32
    %c0_i32_21 = arith.constant 0 : i32
    %86 = arith.cmpi ne, %85, %c0_i32_21 : i32
    scf.if %86 {
      %c0_22 = arith.constant 0 : index
      %c0_23 = arith.constant 0 : index
      %87 = vector.load %arg5[%c0_22, %c0_23] : memref<8x128xf32, #tpu.memory_space<vmem>>, vector<8x128xf32>
      %c0_24 = arith.constant 0 : index
      %c0_25 = arith.constant 0 : index
      %c0_26 = arith.constant 0 : index
      %88 = vector.load %arg4[%c0_24, %c0_25, %c0_26] : memref<1x8x128xf32, #tpu.memory_space<vmem>>, vector<1x8x128xf32>
      %89 = vector.shape_cast %88 : vector<1x8x128xf32> to vector<8x128xf32>
      %90 = vector.shape_cast %87 : vector<8x128xf32> to vector<1x8x128xf32>
      tpu.vector_store %arg4[%c0_24, %c0_25, %c0_26], %90 {strides = array<i32>} : memref<1x8x128xf32, #tpu.memory_space<vmem>>, vector<1x8x128xf32>,
    } else {
    }
    return
  }
  func.func @transform_0(%arg0: i32, %arg1: i32) -> (i32, i32) {
    %c1_i32 = arith.constant 1 : i32
    %0 = arith.muli %arg0, %c1_i32 : i32
    %1 = arith.addi %0, %arg1 : i32
    %c0_i32 = arith.constant 0 : i32
    %c0_i32_0 = arith.constant 0 : i32
    return %1, %c0_i32 : i32, i32
  }
  func.func @transform_1(%arg0: i32, %arg1: i32) -> (i32, i32) {
    %c1_i32 = arith.constant 1 : i32
    %0 = arith.muli %arg0, %c1_i32 : i32
    %1 = arith.addi %0, %arg1 : i32
    %c0_i32 = arith.constant 0 : i32
    %c0_i32_0 = arith.constant 0 : i32
    return %1, %c0_i32 : i32, i32
  }
  func.func @transform_2(%arg0: i32, %arg1: i32) -> (i32, i32, i32) {
    %c0_i32 = arith.constant 0 : i32
    %c0_i32_0 = arith.constant 0 : i32
    %c0_i32_1 = arith.constant 0 : i32
    return %arg0, %c0_i32, %c0_i32_0 : i32, i32, i32
  }
}

</mosaic_0001>

<llo_original>
// kernel: tpu_custom_call.1
$region0: #{tpu_custom_call.1}
  #allocation0 [shape = 'u32[]', space=smem, size = 0x4, offset = 0x4, fixed_abs, tag = 'smem constant byte address 0x4 - core index']
  #allocation1 [shape = 'u32[72,128]{1,0:T(1,128)}', space=vmem, size = 0x9000, scoped, tag = 'internal scratch']
  #allocation2 [shape = 'f32[8,128]{1,0:T(8,128)}', space=vmem, size = 0x1000, scoped, tag = 'scratch operand']
  %s0 = inlined_call_operand.hbm [shape: f32[8,128], index: 0, kind: input, shape index: {}]
  %s1 = inlined_call_operand.hbm [shape: f32[8,12], index: 1, kind: input, shape index: {}]
  %s2 = inlined_call_operand.hbm [shape: f32[1,8,128], index: 2, kind: output, shape index: {}]
  %s3 = sld [smem:[#allocation0]]
  $region34: #{tpu_custom_call.1} parent=0
    _
  %s5 = ssub.s32 1, %s3
  %s6 = scalar_select 0, %s5, %s3
  $region1: #{tpu_custom_call.1} parent=0
    #allocation3 [shape = 'u8[4096]{0}', space=vmem, size = 0x1000, scoped, tag = 'input window, operand 0, single buffered']
    #allocation4 [shape = 's32[1]{0}', space=sflag, size = 0x4, scoped, tag = 'scoped memory for tpu_custom_call.1']
    #allocation5 [shape = 's32[1]{0}', space=sflag, size = 0x4, scoped, tag = 'scoped memory for tpu_custom_call.1']
    #allocation6 [shape = 'u8[4096]{0}', space=vmem, size = 0x1000, scoped, tag = 'input window, operand 1, single buffered']
    #allocation7 [shape = 's32[1]{0}', space=sflag, size = 0x4, scoped, tag = 'scoped memory for tpu_custom_call.1']
    #allocation8 [shape = 'u8[4096]{0}', space=vmem, size = 0x1000, scoped, tag = 'output window, operand 0, single buffered']
    %7 = vsyncpa [#allocation4], 0
    %8 = vsyncpa [#allocation7], 0
    %9 = vsyncpa [#allocation5], 0
    // Predicated region
    $region2: #{tpu_custom_call.1} parent=1 // pred_check
      _
    $region3: #{tpu_custom_call.1} parent=1 // pred_check_branch
      %11 = sbr.rel (0) target = $region5
    $region4: #{tpu_custom_call.1} parent=1 // pred_region
      %s12 = sadd.s32 0, 0
      %14 = vsyncadd [#allocation4], 0
      %s15 = smul.addr %s12, 8
      %s16 = scalar_lea.hbm %s0, %s15
      %s18 = sshll.u32 %s16, 4
      %s19 = int_to_ptr.hbm [resolvable:$true] %s18
      %s20 = sshll.u32 [#allocation3], 4
      %s21 = int_to_ptr.vmem [resolvable:$true] %s20
      %23 = dma.hbm_to_vmem [thread:$0]  %s19, 128, %s21, [#allocation4]
    $region5: #{tpu_custom_call.1} parent=1 // pred_fallthru
      _
    // Predicated region
    $region6: #{tpu_custom_call.1} parent=1 // pred_check
      _
    $region7: #{tpu_custom_call.1} parent=1 // pred_check_branch
      %25 = sbr.rel (0) target = $region9
    $region8: #{tpu_custom_call.1} parent=1 // pred_region
      %s26 = sadd.s32 0, 0
      %28 = vsyncadd [#allocation7], 0
      %s29 = smul.addr %s26, 8
      %s30 = scalar_lea.hbm %s1, %s29
      %s32 = sshll.u32 %s30, 4
      %s33 = int_to_ptr.hbm [resolvable:$true] %s32
      %s34 = sshll.u32 [#allocation6], 4
      %s35 = int_to_ptr.vmem [resolvable:$true] %s34
      %37 = dma.hbm_to_vmem [thread:$0]  %s33, 128, %s35, [#allocation7]
    $region9: #{tpu_custom_call.1} parent=1 // pred_fallthru
      _
    // Predicated region
    $region10: #{tpu_custom_call.1} parent=1 // pred_check
      _
    $region11: #{tpu_custom_call.1} parent=1 // pred_check_branch
      %39 = sbr.rel (0) target = $region13
    $region12: #{tpu_custom_call.1} parent=1 // pred_region
      %41 = dma.done [#allocation4], 128
    $region13: #{tpu_custom_call.1} parent=1 // pred_fallthru
      _
    // Predicated region
    $region14: #{tpu_custom_call.1} parent=1 // pred_check
      _
    $region15: #{tpu_custom_call.1} parent=1 // pred_check_branch
      %43 = sbr.rel (0) target = $region17
    $region16: #{tpu_custom_call.1} parent=1 // pred_region
      %45 = dma.done [#allocation7], 128
    $region17: #{tpu_custom_call.1} parent=1 // pred_fallthru
      _
    %s46 = sadd.s32 0, 0
    %s47 = sadd.s32 0, 0
    %p48 = scmp.eq.s32.totalorder 0, 0
    // Predicated region
    $region18: #{tpu_custom_call.1} parent=1 // pred_check
      %p49 = pneg %p48
    $region19: #{tpu_custom_call.1} parent=1 // pred_check_branch
      %51 = sbr.rel (%p49) target = $region21
    $region20: #{tpu_custom_call.1} parent=1 // pred_region
      %52 = vst [vmem:[#allocation2] sm:$0xff] 0.0
    $region21: #{tpu_custom_call.1} parent=1 // pred_fallthru
      _
    %v53 = vld [vmem:[#allocation3] sm:$0xff]
    %v54 = vld [vmem:[#allocation6] sm:$0xff]
    %v56 = vlaneseq
    %v57 = vand.u32 %v56, 127
    %58 = vset.pattern.permute.xlu0 0
    %59 = vperm.xlu0 %58, %v54
    %v60 = vpop.permute.xlu0 %59
    %vm61 = vcmp.eq.s32.totalorder %v57, %v60
    %62 = vset.pattern.permute.xlu0 4
    %63 = vperm.xlu0 %62, %v54
    %v64 = vpop.permute.xlu0 %63
    %v66 = vsel %vm61, %v64, 0.0
    %67 = vset.pattern.permute.xlu0 8
    %68 = vperm.xlu0 %67, %v54
    %v69 = vpop.permute.xlu0 %68
    %v71 = vsel %vm61, %v69, 0.0
    %72 = vset.pattern.permute.xlu0 1
    %73 = vperm.xlu0 %72, %v54
    %v74 = vpop.permute.xlu0 %73
    %vm75 = vcmp.eq.s32.totalorder %v57, %v74
    %76 = vset.pattern.permute.xlu0 5
    %77 = vperm.xlu0 %76, %v54
    %v78 = vpop.permute.xlu0 %77
    %v80 = vsel %vm75, %v78, 0.0
    %81 = vset.pattern.permute.xlu0 9
    %82 = vperm.xlu0 %81, %v54
    %v83 = vpop.permute.xlu0 %82
    %v85 = vsel %vm75, %v83, 0.0
    %v86 = vadd.f32 %v66, %v80
    %v87 = vadd.f32 %v71, %v85
    %88 = vset.pattern.permute.xlu0 2
    %89 = vperm.xlu0 %88, %v54
    %v90 = vpop.permute.xlu0 %89
    %vm91 = vcmp.eq.s32.totalorder %v57, %v90
    %92 = vset.pattern.permute.xlu0 6
    %93 = vperm.xlu0 %92, %v54
    %v94 = vpop.permute.xlu0 %93
    %v96 = vsel %vm91, %v94, 0.0
    %97 = vset.pattern.permute.xlu0 10
    %98 = vperm.xlu0 %97, %v54
    %v99 = vpop.permute.xlu0 %98
    %v101 = vsel %vm91, %v99, 0.0
    %v102 = vadd.f32 %v86, %v96
    %v103 = vadd.f32 %v87, %v101
    %104 = vset.pattern.permute.xlu0 3
    %105 = vperm.xlu0 %104, %v54
    %v106 = vpop.permute.xlu0 %105
    %vm107 = vcmp.eq.s32.totalorder %v57, %v106
    %108 = vset.pattern.permute.xlu0 7
    %109 = vperm.xlu0 %108, %v54
    %v110 = vpop.permute.xlu0 %109
    %v112 = vsel %vm107, %v110, 0.0
    %113 = vset.pattern.permute.xlu0 11
    %114 = vperm.xlu0 %113, %v54
    %v115 = vpop.permute.xlu0 %114
    %v117 = vsel %vm107, %v115, 0.0
    %v118 = vadd.f32 %v102, %v112
    %v119 = vadd.f32 %v103, %v117
    %v120 = vmul.f32 %v53, %v118
    %v121 = vmax.f32 %v120, 0.9
    %v122 = vmin.f32 %v121, 1.1
    %v123 = vmul.f32 %v122, %v119
    %v124 = vmin.f32 %v120, %v123
    %v125 = vadd.f32 %v53, 1e-07
    %v126 = vlog2.pop %v125
    %v127 = vmul.f32 %v126, 0.6931472
    %v128 = vmul.f32 %v53, %v127
    %v129 = vmul.f32 %v128, 0.01
    %v130 = vsub.f32 %v124, %v129
    %v131 = vld [vmem:[#allocation2] sm:$0xff]
    %v132 = vadd.f32 %v130, 0.0
    %v133 = vadd.f32 %v131, %v132
    %134 = vst [vmem:[#allocation2] sm:$0xff] %v133
    // Predicated region
    $region22: #{tpu_custom_call.1} parent=1 // pred_check
      %p135 = pneg %p48
    $region23: #{tpu_custom_call.1} parent=1 // pred_check_branch
      %137 = sbr.rel (%p135) target = $region25
    $region24: #{tpu_custom_call.1} parent=1 // pred_region
      %v138 = vld [vmem:[#allocation2] sm:$0xff]
      %139 = vst [vmem:[#allocation8] sm:$0xff] %v138
    $region25: #{tpu_custom_call.1} parent=1 // pred_fallthru
      _
    // Predicated region
    $region26: #{tpu_custom_call.1} parent=1 // pred_check
      _
    $region27: #{tpu_custom_call.1} parent=1 // pred_check_branch
      %141 = sbr.rel (0) target = $region29
    $region28: #{tpu_custom_call.1} parent=1 // pred_region
      %143 = vsyncadd [#allocation5], 0
      %s145 = sshll.u32 [#allocation8], 4
      %s146 = int_to_ptr.vmem [resolvable:$true] %s145
      %s147 = sshll.u32 %s2, 4
      %s148 = int_to_ptr.hbm [resolvable:$true] %s147
      %150 = dma.vmem_to_hbm [thread:$0]  %s146, 128, %s148, [#allocation5]
    $region29: #{tpu_custom_call.1} parent=1 // pred_fallthru
      _
    // Predicated region
    $region30: #{tpu_custom_call.1} parent=1 // pred_check
      _
    $region31: #{tpu_custom_call.1} parent=1 // pred_check_branch
      %152 = sbr.rel (0) target = $region33
    $region32: #{tpu_custom_call.1} parent=1 // pred_region
      %154 = dma.done [#allocation5], 128
    $region33: #{tpu_custom_call.1} parent=1 // pred_fallthru
      _
    %155 = vsyncpa [#allocation4], 1
    %156 = vsyncpa [#allocation7], 1
    %157 = vsyncpa [#allocation5], 1

</llo_original>
